<compile_context>
chip_gen: v5e
topology: v5e:2x2
jax: 0.10.0
libtpu: 0.0.40
codegen_flags: <defaults>
</compile_context>

<pallas_src>
import math

import jax
import jax.numpy as jnp
from jax.experimental import pallas as pl
from jax.experimental.pallas import tpu as pltpu

LANE = 128


def moe_linear_kernel(cw_ref, x_ref, w_ref, o_ref):
    """cw [bt,E], x [bt,I], w_packed [E*I+E, O_pad] -> out [bt, O_pad]."""
    cw = cw_ref[...]          # keep native dtype; MXU takes bf16/f32 directly
    x = x_ref[...]
    num_experts = cw_ref.shape[-1]

    # Fold the gate into x (the matmul is linear in x, so this is exact):
    # columns [e*I:(e+1)*I] hold cw[:, e] * x, the last E columns hold cw
    # (which folds the cw @ bias blend into the same GEMM).
    pieces = [cw[:, e:e + 1] * x for e in range(num_experts)]   # each [bt, I]
    pieces.append(cw)                                           # bias rows
    xs = jnp.concatenate(pieces, axis=1)                        # [bt, E*I + E]

    acc = jnp.dot(xs, w_ref[...], preferred_element_type=jnp.float32)
    o_ref[...] = acc.astype(o_ref.dtype)


def pack_params(weight, bias):
    """One-time layout prep (kept OUT of the per-call forward path).

    weight [E, O, I], bias [E, O] -> [E*I + E, O_pad], O padded to a multiple
    of 128 so kernel stores are lane-dense (unmasked vst).
    """
    E, O, I = weight.shape
    assert bias.shape == (E, O)
    w_t = jnp.transpose(weight, (0, 2, 1)).reshape(E * I, O)    # row order: (e, i)
    packed = jnp.concatenate([w_t, bias], axis=0)               # + E bias rows
    o_pad = -O % LANE
    if o_pad:
        packed = jnp.pad(packed, ((0, 0), (0, o_pad)))
    return packed


def _pick_batch_tile(batch):
    # Multiple of 8 (f32 sublane), prefer 128-512 rows, and grid >= 2 so the
    # pipeline has something to overlap and megacore (v7x) can split the axis.
    for bt in (512, 256, 128, 64, 32, 16, 8):
        if batch % bt == 0 and batch // bt >= 2:
            return bt
    return batch


def moe_linear(x, controlweights, w_packed, out_features, *, batch_tile=None):
    """x [B,I], controlweights [B,E], w_packed from pack_params -> [B, out_features]."""
    B, I = x.shape
    Bc, E = controlweights.shape
    K, O_pad = w_packed.shape
    assert Bc == B and K == E * I + E and O_pad % LANE == 0
    assert out_features <= O_pad

    bt = batch_tile or _pick_batch_tile(B)
    assert B % bt == 0

    # Explicit scoped-VMEM budget: >= 32 MiB (v5e default is only 16 MiB),
    # scaled with the resident weight + double-buffered tiles, capped well
    # below v7x's 64 MiB physical VMEM.
    itemsize = jnp.dtype(x.dtype).itemsize
    est = (2 * w_packed.size * jnp.dtype(w_packed.dtype).itemsize
           + 2 * bt * (I + E + O_pad) * itemsize)
    vmem_limit = int(min(max(32 * 1024 * 1024, 2 * est), 96 * 1024 * 1024))
    # Note: on v7x with large E*I*O, additionally single-buffer the
    # constant-index weight spec (pipeline_mode=pl.Buffered(1)) or store the
    # packed weights in bf16, and/or add a second grid axis over O.

    out = pl.pallas_call(
        moe_linear_kernel,
        out_shape=jax.ShapeDtypeStruct((B, O_pad), x.dtype),
        grid_spec=pltpu.PrefetchScalarGridSpec(
            num_scalar_prefetch=0,
            grid=(B // bt,),
            in_specs=[
                pl.BlockSpec((bt, E), lambda i: (i, 0)),      # gate tile
                pl.BlockSpec((bt, I), lambda i: (i, 0)),      # x tile
                pl.BlockSpec((K, O_pad), lambda i: (0, 0)),   # packed weights, resident
            ],
            out_specs=pl.BlockSpec((bt, O_pad), lambda i: (i, 0)),
        ),
        compiler_params=pltpu.CompilerParams(
            dimension_semantics=("parallel",),
            vmem_limit_bytes=vmem_limit),
    )(controlweights, x, w_packed)

    if O_pad == out_features:
        return out
    return out[:, :out_features]


def init_params(key, in_features, out_features, num_experts):
    # Mirrors kaiming_uniform_(a=sqrt(5)) + uniform bias for a 3D [E, O, I] weight.
    kw, kb = jax.random.split(key)
    fan_in = out_features * in_features  # PyTorch fan_in for the 3D tensor
    bound = 1.0 / math.sqrt(fan_in)
    weight = jax.random.uniform(
        kw, (num_experts, out_features, in_features),
        minval=-bound, maxval=bound, dtype=jnp.float32)
    bias = jax.random.uniform(
        kb, (num_experts, out_features),
        minval=-bound, maxval=bound, dtype=jnp.float32)
    return weight, bias


def reference(x, cw, weight, bias):
    # Pure-JAX transcription of the PyTorch forward (blend-then-matmul).
    E, O, I = weight.shape
    w_blend = jnp.matmul(cw, weight.reshape(E, -1)).reshape(-1, O, I)  # [B, O, I]
    b_blend = jnp.matmul(cw, bias)                                     # [B, O]
    return jnp.einsum('boi,bi->bo', w_blend, x) + b_blend


if __name__ == "__main__":
    B, IN, OUT, E = 256, 128, 128, 4   # lane-aligned shapes; batch tile 128 -> grid 2

    key = jax.random.PRNGKey(0)
    k_param, k_x, k_cw = jax.random.split(key, 3)

    weight, bias = init_params(k_param, IN, OUT, E)
    x = jax.random.normal(k_x, (B, IN), dtype=jnp.float32)
    cw = jax.nn.softmax(jax.random.normal(k_cw, (B, E), dtype=jnp.float32), axis=-1)

    # One-time parameter packing (hoisted out of the forward path).
    w_packed = pack_params(weight, bias)

    out = moe_linear(x, cw, w_packed, OUT)
    out = jax.block_until_ready(out)

    ref = reference(x, cw, weight, bias)
    assert out.shape == (B, OUT)
    assert jnp.allclose(out, ref, atol=1e-5, rtol=1e-5), "mismatch vs reference"

    print("KERNEL_OK")
</pallas_src>

<mosaic_0001>
module attributes {stable_mosaic.version = 11 : i64} {
  func.func @moe_linear_kernel(%arg0: i32, %arg1: memref<128x4xf32, #tpu.memory_space<vmem>>, %arg2: memref<128x128xf32, #tpu.memory_space<vmem>>, %arg3: memref<516x128xf32, #tpu.memory_space<vmem>>, %arg4: memref<128x128xf32, #tpu.memory_space<vmem>>) attributes {dimension_semantics = [#tpu.dimension_semantics<parallel>], iteration_bounds = array<i64: 2>, scalar_prefetch = 0 : i64, scratch_operands = 0 : i64, tpu.core_type = #tpu.core_type<tc>, window_params = [{transform_indices = @transform_0, window_bounds = array<i64: 128, 4>}, {transform_indices = @transform_1, window_bounds = array<i64: 128, 128>}, {pipeline_mode = #tpu.pipeline_mode<synchronous>, transform_indices = @transform_2, window_bounds = array<i64: 516, 128>}, {transform_indices = @transform_3, window_bounds = array<i64: 128, 128>}]} {
    %c0 = arith.constant 0 : index
    %c0_0 = arith.constant 0 : index
    %0 = vector.load %arg1[%c0, %c0_0] : memref<128x4xf32, #tpu.memory_space<vmem>>, vector<128x4xf32>
    %c0_1 = arith.constant 0 : index
    %c0_2 = arith.constant 0 : index
    %1 = vector.load %arg2[%c0_1, %c0_2] : memref<128x128xf32, #tpu.memory_space<vmem>>, vector<128x128xf32>
    %2 = vector.extract_strided_slice %0 {offsets = [0, 0], sizes = [128, 1], strides = [1, 1]} : vector<128x4xf32> to vector<128x1xf32>
    %3 = vector.broadcast %2 : vector<128x1xf32> to vector<128x128xf32>
    %4 = arith.mulf %3, %1 : vector<128x128xf32>
    %5 = vector.extract_strided_slice %0 {offsets = [0, 1], sizes = [128, 1], strides = [1, 1]} : vector<128x4xf32> to vector<128x1xf32>
    %6 = vector.broadcast %5 : vector<128x1xf32> to vector<128x128xf32>
    %7 = arith.mulf %6, %1 : vector<128x128xf32>
    %8 = vector.extract_strided_slice %0 {offsets = [0, 2], sizes = [128, 1], strides = [1, 1]} : vector<128x4xf32> to vector<128x1xf32>
    %9 = vector.broadcast %8 : vector<128x1xf32> to vector<128x128xf32>
    %10 = arith.mulf %9, %1 : vector<128x128xf32>
    %11 = vector.extract_strided_slice %0 {offsets = [0, 3], sizes = [128, 1], strides = [1, 1]} : vector<128x4xf32> to vector<128x1xf32>
    %12 = vector.broadcast %11 : vector<128x1xf32> to vector<128x128xf32>
    %13 = arith.mulf %12, %1 : vector<128x128xf32>
    %14 = tpu.concatenate %4, %7, %10, %13, %0 in 1 : vector<128x128xf32>, vector<128x128xf32>, vector<128x128xf32>, vector<128x128xf32>, vector<128x4xf32> -> vector<128x516xf32>
    %c0_3 = arith.constant 0 : index
    %c0_4 = arith.constant 0 : index
    %15 = vector.load %arg3[%c0_3, %c0_4] : memref<516x128xf32, #tpu.memory_space<vmem>>, vector<516x128xf32>
    %cst = arith.constant dense<0.000000e+00> : vector<128x128xf32>
    %16 = tpu.matmul %14, %15, %cst {dimension_numbers = #tpu.dot_dimension_numbers<[1], [0], [0], [1], [0, 0, 1, 1], [], []>} : vector<128x516xf32>, vector<516x128xf32>, vector<128x128xf32> -> vector<128x128xf32>
    %c0_5 = arith.constant 0 : index
    %c0_6 = arith.constant 0 : index
    %17 = vector.load %arg4[%c0_5, %c0_6] : memref<128x128xf32, #tpu.memory_space<vmem>>, vector<128x128xf32>
    tpu.vector_store %arg4[%c0_5, %c0_6], %16 {strides = array<i32>} : memref<128x128xf32, #tpu.memory_space<vmem>>, vector<128x128xf32>,
    return
  }
  func.func @transform_0(%arg0: i32) -> (i32, i32) {
    %c0_i32 = arith.constant 0 : i32
    %c0_i32_0 = arith.constant 0 : i32
    return %arg0, %c0_i32 : i32, i32
  }
  func.func @transform_1(%arg0: i32) -> (i32, i32) {
    %c0_i32 = arith.constant 0 : i32
    %c0_i32_0 = arith.constant 0 : i32
    return %arg0, %c0_i32 : i32, i32
  }
  func.func @transform_2(%arg0: i32) -> (i32, i32) {
    %c0_i32 = arith.constant 0 : i32
    %c0_i32_0 = arith.constant 0 : i32
    %c0_i32_1 = arith.constant 0 : i32
    return %c0_i32, %c0_i32_0 : i32, i32
  }
  func.func @transform_3(%arg0: i32) -> (i32, i32) {
    %c0_i32 = arith.constant 0 : i32
    %c0_i32_0 = arith.constant 0 : i32
    return %arg0, %c0_i32 : i32, i32
  }
}

</mosaic_0001>

<llo_original>
// kernel: tpu_custom_call.1
$region0: #{tpu_custom_call.1}
  #allocation0 [shape = 'u32[]', space=smem, size = 0x4, offset = 0x4, fixed_abs, tag = 'smem constant byte address 0x4 - core index']
  #allocation1 [shape = 'u32[72,128]{1,0:T(1,128)}', space=vmem, size = 0x9000, scoped, tag = 'internal scratch']
  %s0 = inlined_call_operand.vmem [shape: f32[256,4], index: 0, kind: input, shape index: {}]
  %s1 = inlined_call_operand.vmem [shape: f32[256,128], index: 1, kind: input, shape index: {}]
  %s2 = inlined_call_operand.hbm [shape: f32[516,128], index: 2, kind: input, shape index: {}]
  %s3 = inlined_call_operand.hbm [shape: f32[256,128], index: 3, kind: output, shape index: {}]
  %s4 = sld [smem:[#allocation0]]
  $region49: #{tpu_custom_call.1} parent=0
    _
  %s6 = ssub.s32 1, %s4
  %s7 = scalar_select 0, %s6, %s4
  $region1: #{tpu_custom_call.1} parent=0
    #allocation2 [shape = 'u8[266240]{0}', space=vmem, size = 0x41000, scoped, tag = 'input window, operand 2, single buffered']
    #allocation3 [shape = 's32[2]{0}', space=sflag, size = 0x8, scoped, tag = 'scoped memory for tpu_custom_call.1']
    #allocation4 [shape = 's32[2]{0}', space=sflag, size = 0x8, scoped, tag = 'scoped memory for tpu_custom_call.1']
    #allocation5 [shape = 'u8[131072]{0}', space=vmem, size = 0x20000, scoped, tag = 'output window, operand 0']
    %8 = vsyncpa [#allocation3], 0
    %9 = vsyncpa [#allocation4], 0
    %s10 = scalar_lea.sflag [#allocation4], 1
    %11 = vsyncpa %s10, 0
    loop: start=0, step=1, limit=4
    $region2: #{tpu_custom_call.1} parent=1 // loop_pre_header
      _
    $region3: #{tpu_custom_call.1} parent=1 // loop_header
      %s13 = sphi 0, %s17
      %p14 = scmp.ge.s32.totalorder %s13, 4
      %s23 = sphi 0, %s25
      %s26 = sphi 0, %s23
      %s27 = sphi 0, %s26
      %s43 = sphi 0, %s27
      %s49 = sphi 0, %s51
      %s52 = sphi 0, %s49
      %s53 = sphi 0, %s52
      %s69 = sphi 0, %s53
      %s73 = sphi 0, %s73
      %s75 = sphi 0, %s73
      %s76 = sphi 0, %s75
      %s90 = sphi 0, %s76
      %s96 = sphi 0, %s98
      %s99 = sphi 0, %s96
      %s100 = sphi 0, %s99
      %s116 = sphi 0, %s100
    $region4: #{tpu_custom_call.1} parent=1 // loop_header_branch
      %16 = sbr.rel (%p14) target = $region8
    $region5: #{tpu_custom_call.1} parent=1 // loop_body
      %s18 = ssub.s32 %s13, 1
      %s19 = ssub.s32 %s13, 2
      %s20 = sadd.s32 %s13, 1
      %s21 = ssub.s32 %s13, %s20
      %p22 = scmp.eq.s32.totalorder %s21, 0
      %s24 = sadd.s32 %s23, 1
      %s25 = scalar_select %p22, %s23, %s24
      %p28 = pneg %p22
      %p29 = scmp.eq.s32.totalorder %s13, 1
      %p30 = por %p28, %p29
      %p31 = scmp.ne.s32.totalorder %s23, %s26
      %p32 = scmp.eq.s32.totalorder %s13, 0
      %p33 = por %p31, %p32
      %p34 = scmp.ne.s32.totalorder %s23, %s26
      %p35 = scmp.eq.s32.totalorder %s18, 1
      %p36 = por %p34, %p35
      %p37 = scmp.ne.s32.totalorder %s26, %s27
      %p38 = scmp.eq.s32.totalorder %s18, 0
      %p39 = por %p37, %p38
      %p40 = scmp.ne.s32.totalorder %s26, %s27
      %p41 = scmp.eq.s32.totalorder %s19, 1
      %p42 = por %p40, %p41
      %p44 = scmp.ne.s32.totalorder %s27, %s43
      %p45 = scmp.eq.s32.totalorder %s19, 0
      %p46 = por %p44, %p45
      %s47 = ssub.s32 %s13, %s20
      %p48 = scmp.eq.s32.totalorder %s47, 0
      %s50 = sadd.s32 %s49, 1
      %s51 = scalar_select %p48, %s49, %s50
      %p54 = pneg %p48
      %p55 = scmp.eq.s32.totalorder %s13, 1
      %p56 = por %p54, %p55
      %p57 = scmp.ne.s32.totalorder %s49, %s52
      %p58 = scmp.eq.s32.totalorder %s13, 0
      %p59 = por %p57, %p58
      %p60 = scmp.ne.s32.totalorder %s49, %s52
      %p61 = scmp.eq.s32.totalorder %s18, 1
      %p62 = por %p60, %p61
      %p63 = scmp.ne.s32.totalorder %s52, %s53
      %p64 = scmp.eq.s32.totalorder %s18, 0
      %p65 = por %p63, %p64
      %p66 = scmp.ne.s32.totalorder %s52, %s53
      %p67 = scmp.eq.s32.totalorder %s19, 1
      %p68 = por %p66, %p67
      %p70 = scmp.ne.s32.totalorder %s53, %s69
      %p71 = scmp.eq.s32.totalorder %s19, 0
      %p72 = por %p70, %p71
      %s74 = sadd.s32 %s73, 1
      %p77 = scmp.eq.s32.totalorder %s13, 1
      %p78 = scmp.ne.s32.totalorder %s73, %s75
      %p79 = scmp.eq.s32.totalorder %s13, 0
      %p80 = por %p78, %p79
      %p81 = scmp.ne.s32.totalorder %s73, %s75
      %p82 = scmp.eq.s32.totalorder %s18, 1
      %p83 = por %p81, %p82
      %p84 = scmp.ne.s32.totalorder %s75, %s76
      %p85 = scmp.eq.s32.totalorder %s18, 0
      %p86 = por %p84, %p85
      %p87 = scmp.ne.s32.totalorder %s75, %s76
      %p88 = scmp.eq.s32.totalorder %s19, 1
      %p89 = por %p87, %p88
      %p91 = scmp.ne.s32.totalorder %s76, %s90
      %p92 = scmp.eq.s32.totalorder %s19, 0
      %p93 = por %p91, %p92
      %s94 = ssub.s32 %s13, %s20
      %p95 = scmp.eq.s32.totalorder %s94, 0
      %s97 = sadd.s32 %s96, 1
      %s98 = scalar_select %p95, %s96, %s97
      %p101 = pneg %p95
      %p102 = scmp.eq.s32.totalorder %s13, 1
      %p103 = por %p101, %p102
      %p104 = scmp.ne.s32.totalorder %s96, %s99
      %p105 = scmp.eq.s32.totalorder %s13, 0
      %p106 = por %p104, %p105
      %p107 = scmp.ne.s32.totalorder %s96, %s99
      %p108 = scmp.eq.s32.totalorder %s18, 1
      %p109 = por %p107, %p108
      %p110 = scmp.ne.s32.totalorder %s99, %s100
      %p111 = scmp.eq.s32.totalorder %s18, 0
      %p112 = por %p110, %p111
      %p113 = scmp.ne.s32.totalorder %s99, %s100
      %p114 = scmp.eq.s32.totalorder %s19, 1
      %p115 = por %p113, %p114
      %p117 = scmp.ne.s32.totalorder %s100, %s116
      %p118 = scmp.eq.s32.totalorder %s19, 0
      %p119 = por %p117, %p118
      %p120 = scmp.le.s32.totalorder 1, %s13
      %p121 = scmp.lt.s32.totalorder %s13, 3
      %p122 = pnand %p120, %p121
      %p123 = pneg %p122
      // Predicated region
      $region9: #{tpu_custom_call.1} parent=5 // pred_check
        _
      $region10: #{tpu_custom_call.1} parent=5 // pred_check_branch
        %125 = sbr.rel (%p122) target = $region12
      $region11: #{tpu_custom_call.1} parent=5 // pred_region
        %s126 = ssub.s32 %s13, 1
        // Predicated region
        $region13: #{tpu_custom_call.1} parent=11 // pred_check
          %p127 = pneg %p86
        $region14: #{tpu_custom_call.1} parent=11 // pred_check_branch
          %129 = sbr.rel (%p127) target = $region16
        $region15: #{tpu_custom_call.1} parent=11 // pred_region
          %131 = vsyncadd [#allocation3], 0
          %s132 = sshll.u32 %s2, 4
          %s133 = int_to_ptr.hbm [resolvable:$true] %s132
          %s134 = sshll.u32 [#allocation2], 4
          %s135 = int_to_ptr.vmem [resolvable:$true] %s134
          %140 = dma.hbm_to_vmem [thread:$0]  %s133, 8320, %s135, [#allocation3], 128, 128, 8
        $region16: #{tpu_custom_call.1} parent=11 // pred_fallthru
          _
      $region12: #{tpu_custom_call.1} parent=5 // pred_fallthru
        _
      %p141 = scmp.lt.s32.totalorder %s13, 2
      // Predicated region
      $region17: #{tpu_custom_call.1} parent=5 // pred_check
        %p142 = pneg %p141
      $region18: #{tpu_custom_call.1} parent=5 // pred_check_branch
        %144 = sbr.rel (%p142) target = $region20
      $region19: #{tpu_custom_call.1} parent=5 // pred_region
        // Predicated region
        $region21: #{tpu_custom_call.1} parent=19 // pred_check
          %p145 = pneg %p33
        $region22: #{tpu_custom_call.1} parent=19 // pred_check_branch
          %147 = sbr.rel (%p145) target = $region24
        $region23: #{tpu_custom_call.1} parent=19 // pred_region
          %s148 = smul.u32 16, %s13
          %p149 = scmp.lt.s32.totalorder %s148, 31
          %s150 = scalar_select %p149, %s148, 31
          %s151 = smul.addr %s150, 8
          %s152 = scalar_lea.vmem %s0, %s151
          %s153 = smul.u32 16, %s13
        $region24: #{tpu_custom_call.1} parent=19 // pred_fallthru
          _
        // Predicated region
        $region25: #{tpu_custom_call.1} parent=19 // pred_check
          %p154 = pneg %p59
        $region26: #{tpu_custom_call.1} parent=19 // pred_check_branch
          %156 = sbr.rel (%p154) target = $region28
        $region27: #{tpu_custom_call.1} parent=19 // pred_region
          %s157 = smul.u32 16, %s13
          %p158 = scmp.lt.s32.totalorder %s157, 31
          %s159 = scalar_select %p158, %s157, 31
          %s160 = smul.addr %s159, 8
          %s161 = scalar_lea.vmem %s1, %s160
          %s162 = smul.u32 16, %s13
        $region28: #{tpu_custom_call.1} parent=19 // pred_fallthru
          _
      $region20: #{tpu_custom_call.1} parent=5 // pred_fallthru
        _
      %p163 = scmp.le.s32.totalorder 1, %s13
      %p164 = scmp.lt.s32.totalorder %s13, 3
      %p165 = pnand %p163, %p164
      %p166 = pneg %p165
      // Predicated region
      $region29: #{tpu_custom_call.1} parent=5 // pred_check
        _
      $region30: #{tpu_custom_call.1} parent=5 // pred_check_branch
        %168 = sbr.rel (%p165) target = $region32
      $region31: #{tpu_custom_call.1} parent=5 // pred_region
        %s169 = ssub.s32 %s13, 1
        // Predicated region
        $region33: #{tpu_custom_call.1} parent=31 // pred_check
          %p170 = pneg %p86
        $region34: #{tpu_custom_call.1} parent=31 // pred_check_branch
          %172 = sbr.rel (%p170) target = $region36
        $region35: #{tpu_custom_call.1} parent=31 // pred_region
          %174 = dma.done [#allocation3], 8320
        $region36: #{tpu_custom_call.1} parent=31 // pred_fallthru
          _
        %s175 = smul.u32 16, %s18
        %p176 = scmp.lt.s32.totalorder %s175, 31
        %s177 = scalar_select %p176, %s175, 31
        %s178 = smul.addr %s177, 8
        %s179 = scalar_lea.vmem %s0, %s178
        %p180 = pneg %p39
        %p181 = pneg %p36
        %s182 = smul.u32 16, %s18
        %p183 = scmp.lt.s32.totalorder %s182, 31
        %s184 = scalar_select %p183, %s182, 31
        %s185 = smul.addr %s184, 8
        %s186 = scalar_lea.vmem %s1, %s185
        %p187 = pneg %p65
        %p188 = pneg %p62
        %p189 = pneg %p86
        %p190 = pneg %p83
        %p191 = pneg %p112
        %p192 = pneg %p109
        %s193 = sand.u32 %s99, 1
        %s194 = scalar_lea.sflag [#allocation4], %s193
        %s195 = sand.u32 %s99, 1
        %s196 = smul.addr %s195, 128
        %s197 = scalar_lea.vmem [#allocation5], %s196
        %s198 = smul.u32 16, %s18
        %p199 = scmp.lt.s32.totalorder %s198, 31
        %s200 = scalar_select %p199, %s198, 31
        %s201 = smul.addr %s200, 8
        %s202 = scalar_lea.vmem %s0, %s201
        %s203 = smul.u32 16, %s18
        %s204 = smul.u32 16, %s18
        %p205 = scmp.lt.s32.totalorder %s204, 31
        %s206 = scalar_select %p205, %s204, 31
        %s207 = smul.addr %s206, 8
        %s208 = scalar_lea.vmem %s1, %s207
        %s209 = smul.u32 16, %s18
        %s210 = smul.u32 16, %s18
        %v211 = vld [vmem:[%s202] sm:$0xff]
        %v212 = vld [vmem:[%s202 + $0x8] sm:$0xff]
        %v213 = vld [vmem:[%s202 + $0x10] sm:$0xff]
        %v214 = vld [vmem:[%s202 + $0x18] sm:$0xff]
        %v215 = vld [vmem:[%s202 + $0x20] sm:$0xff]
        %v216 = vld [vmem:[%s202 + $0x28] sm:$0xff]
        %v217 = vld [vmem:[%s202 + $0x30] sm:$0xff]
        %v218 = vld [vmem:[%s202 + $0x38] sm:$0xff]
        %v219 = vld [vmem:[%s202 + $0x40] sm:$0xff]
        %v220 = vld [vmem:[%s202 + $0x48] sm:$0xff]
        %v221 = vld [vmem:[%s202 + $0x50] sm:$0xff]
        %v222 = vld [vmem:[%s202 + $0x58] sm:$0xff]
        %v223 = vld [vmem:[%s202 + $0x60] sm:$0xff]
        %v224 = vld [vmem:[%s202 + $0x68] sm:$0xff]
        %v225 = vld [vmem:[%s202 + $0x70] sm:$0xff]
        %v226 = vld [vmem:[%s202 + $0x78] sm:$0xff]
        %v227 = vld [vmem:[%s208] sm:$0xff]
        %v228 = vld [vmem:[%s208 + $0x8] sm:$0xff]
        %v229 = vld [vmem:[%s208 + $0x10] sm:$0xff]
        %v230 = vld [vmem:[%s208 + $0x18] sm:$0xff]
        %v231 = vld [vmem:[%s208 + $0x20] sm:$0xff]
        %v232 = vld [vmem:[%s208 + $0x28] sm:$0xff]
        %v233 = vld [vmem:[%s208 + $0x30] sm:$0xff]
        %v234 = vld [vmem:[%s208 + $0x38] sm:$0xff]
        %v235 = vld [vmem:[%s208 + $0x40] sm:$0xff]
        %v236 = vld [vmem:[%s208 + $0x48] sm:$0xff]
        %v237 = vld [vmem:[%s208 + $0x50] sm:$0xff]
        %v238 = vld [vmem:[%s208 + $0x58] sm:$0xff]
        %v239 = vld [vmem:[%s208 + $0x60] sm:$0xff]
        %v240 = vld [vmem:[%s208 + $0x68] sm:$0xff]
        %v241 = vld [vmem:[%s208 + $0x70] sm:$0xff]
        %v242 = vld [vmem:[%s208 + $0x78] sm:$0xff]
        %244 = vset.pattern.permute.xlu0 0
        %245 = vperm.xlu0 %244, %v211
        %v246 = vpop.permute.xlu0 %245
        %249 = vset.pattern.permute.xlu0 0
        %250 = vperm.xlu0 %249, %v212
        %v251 = vpop.permute.xlu0 %250
        %254 = vset.pattern.permute.xlu0 0
        %255 = vperm.xlu0 %254, %v213
        %v256 = vpop.permute.xlu0 %255
        %259 = vset.pattern.permute.xlu0 0
        %260 = vperm.xlu0 %259, %v214
        %v261 = vpop.permute.xlu0 %260
        %264 = vset.pattern.permute.xlu0 0
        %265 = vperm.xlu0 %264, %v215
        %v266 = vpop.permute.xlu0 %265
        %269 = vset.pattern.permute.xlu0 0
        %270 = vperm.xlu0 %269, %v216
        %v271 = vpop.permute.xlu0 %270
        %274 = vset.pattern.permute.xlu0 0
        %275 = vperm.xlu0 %274, %v217
        %v276 = vpop.permute.xlu0 %275
        %279 = vset.pattern.permute.xlu0 0
        %280 = vperm.xlu0 %279, %v218
        %v281 = vpop.permute.xlu0 %280
        %284 = vset.pattern.permute.xlu0 0
        %285 = vperm.xlu0 %284, %v219
        %v286 = vpop.permute.xlu0 %285
        %289 = vset.pattern.permute.xlu0 0
        %290 = vperm.xlu0 %289, %v220
        %v291 = vpop.permute.xlu0 %290
        %294 = vset.pattern.permute.xlu0 0
        %295 = vperm.xlu0 %294, %v221
        %v296 = vpop.permute.xlu0 %295
        %299 = vset.pattern.permute.xlu0 0
        %300 = vperm.xlu0 %299, %v222
        %v301 = vpop.permute.xlu0 %300
        %304 = vset.pattern.permute.xlu0 0
        %305 = vperm.xlu0 %304, %v223
        %v306 = vpop.permute.xlu0 %305
        %309 = vset.pattern.permute.xlu0 0
        %310 = vperm.xlu0 %309, %v224
        %v311 = vpop.permute.xlu0 %310
        %314 = vset.pattern.permute.xlu0 0
        %315 = vperm.xlu0 %314, %v225
        %v316 = vpop.permute.xlu0 %315
        %319 = vset.pattern.permute.xlu0 0
        %320 = vperm.xlu0 %319, %v226
        %v321 = vpop.permute.xlu0 %320
        %v323 = vmul.f32 %v246, %v227
        %v324 = vmul.f32 %v251, %v228
        %v325 = vmul.f32 %v256, %v229
        %v326 = vmul.f32 %v261, %v230
        %v327 = vmul.f32 %v266, %v231
        %v328 = vmul.f32 %v271, %v232
        %v329 = vmul.f32 %v276, %v233
        %v330 = vmul.f32 %v281, %v234
        %v331 = vmul.f32 %v286, %v235
        %v332 = vmul.f32 %v291, %v236
        %v333 = vmul.f32 %v296, %v237
        %v334 = vmul.f32 %v301, %v238
        %v335 = vmul.f32 %v306, %v239
        %v336 = vmul.f32 %v311, %v240
        %v337 = vmul.f32 %v316, %v241
        %v338 = vmul.f32 %v321, %v242
        %339 = vset.pattern.permute.xlu0 1
        %340 = vperm.xlu0 %339, %v211
        %v341 = vpop.permute.xlu0 %340
        %343 = vset.pattern.permute.xlu0 1
        %344 = vperm.xlu0 %343, %v212
        %v345 = vpop.permute.xlu0 %344
        %347 = vset.pattern.permute.xlu0 1
        %348 = vperm.xlu0 %347, %v213
        %v349 = vpop.permute.xlu0 %348
        %351 = vset.pattern.permute.xlu0 1
        %352 = vperm.xlu0 %351, %v214
        %v353 = vpop.permute.xlu0 %352
        %355 = vset.pattern.permute.xlu0 1
        %356 = vperm.xlu0 %355, %v215
        %v357 = vpop.permute.xlu0 %356
        %359 = vset.pattern.permute.xlu0 1
        %360 = vperm.xlu0 %359, %v216
        %v361 = vpop.permute.xlu0 %360
        %363 = vset.pattern.permute.xlu0 1
        %364 = vperm.xlu0 %363, %v217
        %v365 = vpop.permute.xlu0 %364
        %367 = vset.pattern.permute.xlu0 1
        %368 = vperm.xlu0 %367, %v218
        %v369 = vpop.permute.xlu0 %368
        %371 = vset.pattern.permute.xlu0 1
        %372 = vperm.xlu0 %371, %v219
        %v373 = vpop.permute.xlu0 %372
        %375 = vset.pattern.permute.xlu0 1
        %376 = vperm.xlu0 %375, %v220
        %v377 = vpop.permute.xlu0 %376
        %379 = vset.pattern.permute.xlu0 1
        %380 = vperm.xlu0 %379, %v221
        %v381 = vpop.permute.xlu0 %380
        %383 = vset.pattern.permute.xlu0 1
        %384 = vperm.xlu0 %383, %v222
        %v385 = vpop.permute.xlu0 %384
        %387 = vset.pattern.permute.xlu0 1
        %388 = vperm.xlu0 %387, %v223
        %v389 = vpop.permute.xlu0 %388
        %391 = vset.pattern.permute.xlu0 1
        %392 = vperm.xlu0 %391, %v224
        %v393 = vpop.permute.xlu0 %392
        %395 = vset.pattern.permute.xlu0 1
        %396 = vperm.xlu0 %395, %v225
        %v397 = vpop.permute.xlu0 %396
        %399 = vset.pattern.permute.xlu0 1
        %400 = vperm.xlu0 %399, %v226
        %v401 = vpop.permute.xlu0 %400
        %v403 = vmul.f32 %v341, %v227
        %v404 = vmul.f32 %v345, %v228
        %v405 = vmul.f32 %v349, %v229
        %v406 = vmul.f32 %v353, %v230
        %v407 = vmul.f32 %v357, %v231
        %v408 = vmul.f32 %v361, %v232
        %v409 = vmul.f32 %v365, %v233
        %v410 = vmul.f32 %v369, %v234
        %v411 = vmul.f32 %v373, %v235
        %v412 = vmul.f32 %v377, %v236
        %v413 = vmul.f32 %v381, %v237
        %v414 = vmul.f32 %v385, %v238
        %v415 = vmul.f32 %v389, %v239
        %v416 = vmul.f32 %v393, %v240
        %v417 = vmul.f32 %v397, %v241
        %v418 = vmul.f32 %v401, %v242
        %419 = vset.pattern.permute.xlu0 2
        %420 = vperm.xlu0 %419, %v211
        %v421 = vpop.permute.xlu0 %420
        %423 = vset.pattern.permute.xlu0 2
        %424 = vperm.xlu0 %423, %v212
        %v425 = vpop.permute.xlu0 %424
        %427 = vset.pattern.permute.xlu0 2
        %428 = vperm.xlu0 %427, %v213
        %v429 = vpop.permute.xlu0 %428
        %431 = vset.pattern.permute.xlu0 2
        %432 = vperm.xlu0 %431, %v214
        %v433 = vpop.permute.xlu0 %432
        %435 = vset.pattern.permute.xlu0 2
        %436 = vperm.xlu0 %435, %v215
        %v437 = vpop.permute.xlu0 %436
        %439 = vset.pattern.permute.xlu0 2
        %440 = vperm.xlu0 %439, %v216
        %v441 = vpop.permute.xlu0 %440
        %443 = vset.pattern.permute.xlu0 2
        %444 = vperm.xlu0 %443, %v217
        %v445 = vpop.permute.xlu0 %444
        %447 = vset.pattern.permute.xlu0 2
        %448 = vperm.xlu0 %447, %v218
        %v449 = vpop.permute.xlu0 %448
        %451 = vset.pattern.permute.xlu0 2
        %452 = vperm.xlu0 %451, %v219
        %v453 = vpop.permute.xlu0 %452
        %455 = vset.pattern.permute.xlu0 2
        %456 = vperm.xlu0 %455, %v220
        %v457 = vpop.permute.xlu0 %456
        %459 = vset.pattern.permute.xlu0 2
        %460 = vperm.xlu0 %459, %v221
        %v461 = vpop.permute.xlu0 %460
        %463 = vset.pattern.permute.xlu0 2
        %464 = vperm.xlu0 %463, %v222
        %v465 = vpop.permute.xlu0 %464
        %467 = vset.pattern.permute.xlu0 2
        %468 = vperm.xlu0 %467, %v223
        %v469 = vpop.permute.xlu0 %468
        %471 = vset.pattern.permute.xlu0 2
        %472 = vperm.xlu0 %471, %v224
        %v473 = vpop.permute.xlu0 %472
        %475 = vset.pattern.permute.xlu0 2
        %476 = vperm.xlu0 %475, %v225
        %v477 = vpop.permute.xlu0 %476
        %479 = vset.pattern.permute.xlu0 2
        %480 = vperm.xlu0 %479, %v226
        %v481 = vpop.permute.xlu0 %480
        %v483 = vmul.f32 %v421, %v227
        %v484 = vmul.f32 %v425, %v228
        %v485 = vmul.f32 %v429, %v229
        %v486 = vmul.f32 %v433, %v230
        %v487 = vmul.f32 %v437, %v231
        %v488 = vmul.f32 %v441, %v232
        %v489 = vmul.f32 %v445, %v233
        %v490 = vmul.f32 %v449, %v234
        %v491 = vmul.f32 %v453, %v235
        %v492 = vmul.f32 %v457, %v236
        %v493 = vmul.f32 %v461, %v237
        %v494 = vmul.f32 %v465, %v238
        %v495 = vmul.f32 %v469, %v239
        %v496 = vmul.f32 %v473, %v240
        %v497 = vmul.f32 %v477, %v241
        %v498 = vmul.f32 %v481, %v242
        %499 = vset.pattern.permute.xlu0 3
        %500 = vperm.xlu0 %499, %v211
        %v501 = vpop.permute.xlu0 %500
        %503 = vset.pattern.permute.xlu0 3
        %504 = vperm.xlu0 %503, %v212
        %v505 = vpop.permute.xlu0 %504
        %507 = vset.pattern.permute.xlu0 3
        %508 = vperm.xlu0 %507, %v213
        %v509 = vpop.permute.xlu0 %508
        %511 = vset.pattern.permute.xlu0 3
        %512 = vperm.xlu0 %511, %v214
        %v513 = vpop.permute.xlu0 %512
        %515 = vset.pattern.permute.xlu0 3
        %516 = vperm.xlu0 %515, %v215
        %v517 = vpop.permute.xlu0 %516
        %519 = vset.pattern.permute.xlu0 3
        %520 = vperm.xlu0 %519, %v216
        %v521 = vpop.permute.xlu0 %520
        %523 = vset.pattern.permute.xlu0 3
        %524 = vperm.xlu0 %523, %v217
        %v525 = vpop.permute.xlu0 %524
        %527 = vset.pattern.permute.xlu0 3
        %528 = vperm.xlu0 %527, %v218
        %v529 = vpop.permute.xlu0 %528
        %531 = vset.pattern.permute.xlu0 3
        %532 = vperm.xlu0 %531, %v219
        %v533 = vpop.permute.xlu0 %532
        %535 = vset.pattern.permute.xlu0 3
        %536 = vperm.xlu0 %535, %v220
        %v537 = vpop.permute.xlu0 %536
        %539 = vset.pattern.permute.xlu0 3
        %540 = vperm.xlu0 %539, %v221
        %v541 = vpop.permute.xlu0 %540
        %543 = vset.pattern.permute.xlu0 3
        %544 = vperm.xlu0 %543, %v222
        %v545 = vpop.permute.xlu0 %544
        %547 = vset.pattern.permute.xlu0 3
        %548 = vperm.xlu0 %547, %v223
        %v549 = vpop.permute.xlu0 %548
        %551 = vset.pattern.permute.xlu0 3
        %552 = vperm.xlu0 %551, %v224
        %v553 = vpop.permute.xlu0 %552
        %555 = vset.pattern.permute.xlu0 3
        %556 = vperm.xlu0 %555, %v225
        %v557 = vpop.permute.xlu0 %556
        %559 = vset.pattern.permute.xlu0 3
        %560 = vperm.xlu0 %559, %v226
        %v561 = vpop.permute.xlu0 %560
        %v563 = vmul.f32 %v501, %v227
        %v564 = vmul.f32 %v505, %v228
        %v565 = vmul.f32 %v509, %v229
        %v566 = vmul.f32 %v513, %v230
        %v567 = vmul.f32 %v517, %v231
        %v568 = vmul.f32 %v521, %v232
        %v569 = vmul.f32 %v525, %v233
        %v570 = vmul.f32 %v529, %v234
        %v571 = vmul.f32 %v533, %v235
        %v572 = vmul.f32 %v537, %v236
        %v573 = vmul.f32 %v541, %v237
        %v574 = vmul.f32 %v545, %v238
        %v575 = vmul.f32 %v549, %v239
        %v576 = vmul.f32 %v553, %v240
        %v577 = vmul.f32 %v557, %v241
        %v578 = vmul.f32 %v561, %v242
        %v579 = vld [vmem:[#allocation2] sm:$0xff]
        %v580 = vld [vmem:[#allocation2 + $0x8] sm:$0xff]
        %v581 = vld [vmem:[#allocation2 + $0x10] sm:$0xff]
        %v582 = vld [vmem:[#allocation2 + $0x18] sm:$0xff]
        %v583 = vld [vmem:[#allocation2 + $0x20] sm:$0xff]
        %v584 = vld [vmem:[#allocation2 + $0x28] sm:$0xff]
        %v585 = vld [vmem:[#allocation2 + $0x30] sm:$0xff]
        %v586 = vld [vmem:[#allocation2 + $0x38] sm:$0xff]
        %v587 = vld [vmem:[#allocation2 + $0x40] sm:$0xff]
        %v588 = vld [vmem:[#allocation2 + $0x48] sm:$0xff]
        %v589 = vld [vmem:[#allocation2 + $0x50] sm:$0xff]
        %v590 = vld [vmem:[#allocation2 + $0x58] sm:$0xff]
        %v591 = vld [vmem:[#allocation2 + $0x60] sm:$0xff]
        %v592 = vld [vmem:[#allocation2 + $0x68] sm:$0xff]
        %v593 = vld [vmem:[#allocation2 + $0x70] sm:$0xff]
        %v594 = vld [vmem:[#allocation2 + $0x78] sm:$0xff]
        %v595 = vld [vmem:[#allocation2 + $0x80] sm:$0xff]
        %v596 = vld [vmem:[#allocation2 + $0x88] sm:$0xff]
        %v597 = vld [vmem:[#allocation2 + $0x90] sm:$0xff]
        %v598 = vld [vmem:[#allocation2 + $0x98] sm:$0xff]
        %v599 = vld [vmem:[#allocation2 + $0xa0] sm:$0xff]
        %v600 = vld [vmem:[#allocation2 + $0xa8] sm:$0xff]
        %v601 = vld [vmem:[#allocation2 + $0xb0] sm:$0xff]
        %v602 = vld [vmem:[#allocation2 + $0xb8] sm:$0xff]
        %v603 = vld [vmem:[#allocation2 + $0xc0] sm:$0xff]
        %v604 = vld [vmem:[#allocation2 + $0xc8] sm:$0xff]
        %v605 = vld [vmem:[#allocation2 + $0xd0] sm:$0xff]
        %v606 = vld [vmem:[#allocation2 + $0xd8] sm:$0xff]
        %v607 = vld [vmem:[#allocation2 + $0xe0] sm:$0xff]
        %v608 = vld [vmem:[#allocation2 + $0xe8] sm:$0xff]
        %v609 = vld [vmem:[#allocation2 + $0xf0] sm:$0xff]
        %v610 = vld [vmem:[#allocation2 + $0xf8] sm:$0xff]
        %v611 = vld [vmem:[#allocation2 + $0x100] sm:$0xff]
        %v612 = vld [vmem:[#allocation2 + $0x108] sm:$0xff]
        %v613 = vld [vmem:[#allocation2 + $0x110] sm:$0xff]
        %v614 = vld [vmem:[#allocation2 + $0x118] sm:$0xff]
        %v615 = vld [vmem:[#allocation2 + $0x120] sm:$0xff]
        %v616 = vld [vmem:[#allocation2 + $0x128] sm:$0xff]
        %v617 = vld [vmem:[#allocation2 + $0x130] sm:$0xff]
        %v618 = vld [vmem:[#allocation2 + $0x138] sm:$0xff]
        %v619 = vld [vmem:[#allocation2 + $0x140] sm:$0xff]
        %v620 = vld [vmem:[#allocation2 + $0x148] sm:$0xff]
        %v621 = vld [vmem:[#allocation2 + $0x150] sm:$0xff]
        %v622 = vld [vmem:[#allocation2 + $0x158] sm:$0xff]
        %v623 = vld [vmem:[#allocation2 + $0x160] sm:$0xff]
        %v624 = vld [vmem:[#allocation2 + $0x168] sm:$0xff]
        %v625 = vld [vmem:[#allocation2 + $0x170] sm:$0xff]
        %v626 = vld [vmem:[#allocation2 + $0x178] sm:$0xff]
        %v627 = vld [vmem:[#allocation2 + $0x180] sm:$0xff]
        %v628 = vld [vmem:[#allocation2 + $0x188] sm:$0xff]
        %v629 = vld [vmem:[#allocation2 + $0x190] sm:$0xff]
        %v630 = vld [vmem:[#allocation2 + $0x198] sm:$0xff]
        %v631 = vld [vmem:[#allocation2 + $0x1a0] sm:$0xff]
        %v632 = vld [vmem:[#allocation2 + $0x1a8] sm:$0xff]
        %v633 = vld [vmem:[#allocation2 + $0x1b0] sm:$0xff]
        %v634 = vld [vmem:[#allocation2 + $0x1b8] sm:$0xff]
        %v635 = vld [vmem:[#allocation2 + $0x1c0] sm:$0xff]
        %v636 = vld [vmem:[#allocation2 + $0x1c8] sm:$0xff]
        %v637 = vld [vmem:[#allocation2 + $0x1d0] sm:$0xff]
        %v638 = vld [vmem:[#allocation2 + $0x1d8] sm:$0xff]
        %v639 = vld [vmem:[#allocation2 + $0x1e0] sm:$0xff]
        %v640 = vld [vmem:[#allocation2 + $0x1e8] sm:$0xff]
        %v641 = vld [vmem:[#allocation2 + $0x1f0] sm:$0xff]
        %v642 = vld [vmem:[#allocation2 + $0x1f8] sm:$0xff]
        %v643 = vld [vmem:[#allocation2 + $0x200] sm:$0xf]
        %vm644 = vcmask 31744
        %v645 = vsel %vm644, %v211, 0
        %v647 = vsel %vm644, %v212, 0
        %v649 = vsel %vm644, %v213, 0
        %v651 = vsel %vm644, %v214, 0
        %v653 = vsel %vm644, %v215, 0
        %v655 = vsel %vm644, %v216, 0
        %v657 = vsel %vm644, %v217, 0
        %v659 = vsel %vm644, %v218, 0
        %v661 = vsel %vm644, %v219, 0
        %v663 = vsel %vm644, %v220, 0
        %v665 = vsel %vm644, %v221, 0
        %v667 = vsel %vm644, %v222, 0
        %v669 = vsel %vm644, %v223, 0
        %v671 = vsel %vm644, %v224, 0
        %v673 = vsel %vm644, %v225, 0
        %v675 = vsel %vm644, %v226, 0
        %vm677 = vcmask 1043456
        %v679 = vsel %vm677, %v643, 0
        %681 = vmatpush.msra.mxu0 %v594
        %682 = vmatpush.msra.mxu0 %v593
        %683 = vmatpush.msra.mxu0 %v592
        %684 = vmatpush.msra.mxu0 %v591
        %685 = vmatpush.msra.mxu0 %v590
        %686 = vmatpush.msra.mxu0 %v589
        %687 = vmatpush.msra.mxu0 %v588
        %688 = vmatpush.msra.mxu0 %v587
        %689 = vmatpush.msra.mxu0 %v586
        %690 = vmatpush.msra.mxu0 %v585
        %691 = vmatpush.msra.mxu0 %v584
        %692 = vmatpush.msra.mxu0 %v583
        %693 = vmatpush.msra.mxu0 %v582
        %694 = vmatpush.msra.mxu0 %v581
        %695 = vmatpush.msra.mxu0 %v580
        %696 = vmatpush.msra.mxu0 %v579
        %697 = vmatmul.f32.gmra.mxu0 %v323
        %v698 = vpop.f32.mrf.mxu0
        %v699 = vadd.f32 0.0, %v698
        %700 = vmatmul.f32.gmra.mxu0 %v324
        %v701 = vpop.f32.mrf.mxu0
        %v702 = vadd.f32 0.0, %v701
        %703 = vmatmul.f32.gmra.mxu0 %v325
        %v704 = vpop.f32.mrf.mxu0
        %v705 = vadd.f32 0.0, %v704
        %706 = vmatmul.f32.gmra.mxu0 %v326
        %v707 = vpop.f32.mrf.mxu0
        %v708 = vadd.f32 0.0, %v707
        %709 = vmatmul.f32.gmra.mxu0 %v327
        %v710 = vpop.f32.mrf.mxu0
        %v711 = vadd.f32 0.0, %v710
        %712 = vmatmul.f32.gmra.mxu0 %v328
        %v713 = vpop.f32.mrf.mxu0
        %v714 = vadd.f32 0.0, %v713
        %715 = vmatmul.f32.gmra.mxu0 %v329
        %v716 = vpop.f32.mrf.mxu0
        %v717 = vadd.f32 0.0, %v716
        %718 = vmatmul.f32.gmra.mxu0 %v330
        %v719 = vpop.f32.mrf.mxu0
        %v720 = vadd.f32 0.0, %v719
        %721 = vmatmul.f32.gmra.mxu0 %v331
        %v722 = vpop.f32.mrf.mxu0
        %v723 = vadd.f32 0.0, %v722
        %724 = vmatmul.f32.gmra.mxu0 %v332
        %v725 = vpop.f32.mrf.mxu0
        %v726 = vadd.f32 0.0, %v725
        %727 = vmatmul.f32.gmra.mxu0 %v333
        %v728 = vpop.f32.mrf.mxu0
        %v729 = vadd.f32 0.0, %v728
        %730 = vmatmul.f32.gmra.mxu0 %v334
        %v731 = vpop.f32.mrf.mxu0
        %v732 = vadd.f32 0.0, %v731
        %733 = vmatmul.f32.gmra.mxu0 %v335
        %v734 = vpop.f32.mrf.mxu0
        %v735 = vadd.f32 0.0, %v734
        %736 = vmatmul.f32.gmra.mxu0 %v336
        %v737 = vpop.f32.mrf.mxu0
        %v738 = vadd.f32 0.0, %v737
        %739 = vmatmul.f32.gmra.mxu0 %v337
        %v740 = vpop.f32.mrf.mxu0
        %v741 = vadd.f32 0.0, %v740
        %742 = vmatmul.f32.gmra.mxu0 %v338
        %v743 = vpop.f32.mrf.mxu0
        %v744 = vadd.f32 0.0, %v743
        %745 = vdwg.mxu0
        %746 = vmatpush.msra.mxu0 %v610
        %747 = vmatpush.msra.mxu0 %v609
        %748 = vmatpush.msra.mxu0 %v608
        %749 = vmatpush.msra.mxu0 %v607
        %750 = vmatpush.msra.mxu0 %v606
        %751 = vmatpush.msra.mxu0 %v605
        %752 = vmatpush.msra.mxu0 %v604
        %753 = vmatpush.msra.mxu0 %v603
        %754 = vmatpush.msra.mxu0 %v602
        %755 = vmatpush.msra.mxu0 %v601
        %756 = vmatpush.msra.mxu0 %v600
        %757 = vmatpush.msra.mxu0 %v599
        %758 = vmatpush.msra.mxu0 %v598
        %759 = vmatpush.msra.mxu0 %v597
        %760 = vmatpush.msra.mxu0 %v596
        %761 = vmatpush.msra.mxu0 %v595
        %762 = vmatmul.f32.gmra.mxu0 %v403
        %v763 = vpop.f32.mrf.mxu0
        %v764 = vadd.f32 %v699, %v763
        %765 = vmatmul.f32.gmra.mxu0 %v404
        %v766 = vpop.f32.mrf.mxu0
        %v767 = vadd.f32 %v702, %v766
        %768 = vmatmul.f32.gmra.mxu0 %v405
        %v769 = vpop.f32.mrf.mxu0
        %v770 = vadd.f32 %v705, %v769
        %771 = vmatmul.f32.gmra.mxu0 %v406
        %v772 = vpop.f32.mrf.mxu0
        %v773 = vadd.f32 %v708, %v772
        %774 = vmatmul.f32.gmra.mxu0 %v407
        %v775 = vpop.f32.mrf.mxu0
        %v776 = vadd.f32 %v711, %v775
        %777 = vmatmul.f32.gmra.mxu0 %v408
        %v778 = vpop.f32.mrf.mxu0
        %v779 = vadd.f32 %v714, %v778
        %780 = vmatmul.f32.gmra.mxu0 %v409
        %v781 = vpop.f32.mrf.mxu0
        %v782 = vadd.f32 %v717, %v781
        %783 = vmatmul.f32.gmra.mxu0 %v410
        %v784 = vpop.f32.mrf.mxu0
        %v785 = vadd.f32 %v720, %v784
        %786 = vmatmul.f32.gmra.mxu0 %v411
        %v787 = vpop.f32.mrf.mxu0
        %v788 = vadd.f32 %v723, %v787
        %789 = vmatmul.f32.gmra.mxu0 %v412
        %v790 = vpop.f32.mrf.mxu0
        %v791 = vadd.f32 %v726, %v790
        %792 = vmatmul.f32.gmra.mxu0 %v413
        %v793 = vpop.f32.mrf.mxu0
        %v794 = vadd.f32 %v729, %v793
        %795 = vmatmul.f32.gmra.mxu0 %v414
        %v796 = vpop.f32.mrf.mxu0
        %v797 = vadd.f32 %v732, %v796
        %798 = vmatmul.f32.gmra.mxu0 %v415
        %v799 = vpop.f32.mrf.mxu0
        %v800 = vadd.f32 %v735, %v799
        %801 = vmatmul.f32.gmra.mxu0 %v416
        %v802 = vpop.f32.mrf.mxu0
        %v803 = vadd.f32 %v738, %v802
        %804 = vmatmul.f32.gmra.mxu0 %v417
        %v805 = vpop.f32.mrf.mxu0
        %v806 = vadd.f32 %v741, %v805
        %807 = vmatmul.f32.gmra.mxu0 %v418
        %v808 = vpop.f32.mrf.mxu0
        %v809 = vadd.f32 %v744, %v808
        %810 = vdwg.mxu0
        %811 = vmatpush.msra.mxu0 %v626
        %812 = vmatpush.msra.mxu0 %v625
        %813 = vmatpush.msra.mxu0 %v624
        %814 = vmatpush.msra.mxu0 %v623
        %815 = vmatpush.msra.mxu0 %v622
        %816 = vmatpush.msra.mxu0 %v621
        %817 = vmatpush.msra.mxu0 %v620
        %818 = vmatpush.msra.mxu0 %v619
        %819 = vmatpush.msra.mxu0 %v618
        %820 = vmatpush.msra.mxu0 %v617
        %821 = vmatpush.msra.mxu0 %v616
        %822 = vmatpush.msra.mxu0 %v615
        %823 = vmatpush.msra.mxu0 %v614
        %824 = vmatpush.msra.mxu0 %v613
        %825 = vmatpush.msra.mxu0 %v612
        %826 = vmatpush.msra.mxu0 %v611
        %827 = vmatmul.f32.gmra.mxu0 %v483
        %v828 = vpop.f32.mrf.mxu0
        %v829 = vadd.f32 %v764, %v828
        %830 = vmatmul.f32.gmra.mxu0 %v484
        %v831 = vpop.f32.mrf.mxu0
        %v832 = vadd.f32 %v767, %v831
        %833 = vmatmul.f32.gmra.mxu0 %v485
        %v834 = vpop.f32.mrf.mxu0
        %v835 = vadd.f32 %v770, %v834
        %836 = vmatmul.f32.gmra.mxu0 %v486
        %v837 = vpop.f32.mrf.mxu0
        %v838 = vadd.f32 %v773, %v837
        %839 = vmatmul.f32.gmra.mxu0 %v487
        %v840 = vpop.f32.mrf.mxu0
        %v841 = vadd.f32 %v776, %v840
        %842 = vmatmul.f32.gmra.mxu0 %v488
        %v843 = vpop.f32.mrf.mxu0
        %v844 = vadd.f32 %v779, %v843
        %845 = vmatmul.f32.gmra.mxu0 %v489
        %v846 = vpop.f32.mrf.mxu0
        %v847 = vadd.f32 %v782, %v846
        %848 = vmatmul.f32.gmra.mxu0 %v490
        %v849 = vpop.f32.mrf.mxu0
        %v850 = vadd.f32 %v785, %v849
        %851 = vmatmul.f32.gmra.mxu0 %v491
        %v852 = vpop.f32.mrf.mxu0
        %v853 = vadd.f32 %v788, %v852
        %854 = vmatmul.f32.gmra.mxu0 %v492
        %v855 = vpop.f32.mrf.mxu0
        %v856 = vadd.f32 %v791, %v855
        %857 = vmatmul.f32.gmra.mxu0 %v493
        %v858 = vpop.f32.mrf.mxu0
        %v859 = vadd.f32 %v794, %v858
        %860 = vmatmul.f32.gmra.mxu0 %v494
        %v861 = vpop.f32.mrf.mxu0
        %v862 = vadd.f32 %v797, %v861
        %863 = vmatmul.f32.gmra.mxu0 %v495
        %v864 = vpop.f32.mrf.mxu0
        %v865 = vadd.f32 %v800, %v864
        %866 = vmatmul.f32.gmra.mxu0 %v496
        %v867 = vpop.f32.mrf.mxu0
        %v868 = vadd.f32 %v803, %v867
        %869 = vmatmul.f32.gmra.mxu0 %v497
        %v870 = vpop.f32.mrf.mxu0
        %v871 = vadd.f32 %v806, %v870
        %872 = vmatmul.f32.gmra.mxu0 %v498
        %v873 = vpop.f32.mrf.mxu0
        %v874 = vadd.f32 %v809, %v873
        %875 = vdwg.mxu0
        %876 = vmatpush.msra.mxu0 %v642
        %877 = vmatpush.msra.mxu0 %v641
        %878 = vmatpush.msra.mxu0 %v640
        %879 = vmatpush.msra.mxu0 %v639
        %880 = vmatpush.msra.mxu0 %v638
        %881 = vmatpush.msra.mxu0 %v637
        %882 = vmatpush.msra.mxu0 %v636
        %883 = vmatpush.msra.mxu0 %v635
        %884 = vmatpush.msra.mxu0 %v634
        %885 = vmatpush.msra.mxu0 %v633
        %886 = vmatpush.msra.mxu0 %v632
        %887 = vmatpush.msra.mxu0 %v631
        %888 = vmatpush.msra.mxu0 %v630
        %889 = vmatpush.msra.mxu0 %v629
        %890 = vmatpush.msra.mxu0 %v628
        %891 = vmatpush.msra.mxu0 %v627
        %892 = vmatmul.f32.gmra.mxu0 %v563
        %v893 = vpop.f32.mrf.mxu0
        %v894 = vadd.f32 %v829, %v893
        %895 = vmatmul.f32.gmra.mxu0 %v564
        %v896 = vpop.f32.mrf.mxu0
        %v897 = vadd.f32 %v832, %v896
        %898 = vmatmul.f32.gmra.mxu0 %v565
        %v899 = vpop.f32.mrf.mxu0
        %v900 = vadd.f32 %v835, %v899
        %901 = vmatmul.f32.gmra.mxu0 %v566
        %v902 = vpop.f32.mrf.mxu0
        %v903 = vadd.f32 %v838, %v902
        %904 = vmatmul.f32.gmra.mxu0 %v567
        %v905 = vpop.f32.mrf.mxu0
        %v906 = vadd.f32 %v841, %v905
        %907 = vmatmul.f32.gmra.mxu0 %v568
        %v908 = vpop.f32.mrf.mxu0
        %v909 = vadd.f32 %v844, %v908
        %910 = vmatmul.f32.gmra.mxu0 %v569
        %v911 = vpop.f32.mrf.mxu0
        %v912 = vadd.f32 %v847, %v911
        %913 = vmatmul.f32.gmra.mxu0 %v570
        %v914 = vpop.f32.mrf.mxu0
        %v915 = vadd.f32 %v850, %v914
        %916 = vmatmul.f32.gmra.mxu0 %v571
        %v917 = vpop.f32.mrf.mxu0
        %v918 = vadd.f32 %v853, %v917
        %919 = vmatmul.f32.gmra.mxu0 %v572
        %v920 = vpop.f32.mrf.mxu0
        %v921 = vadd.f32 %v856, %v920
        %922 = vmatmul.f32.gmra.mxu0 %v573
        %v923 = vpop.f32.mrf.mxu0
        %v924 = vadd.f32 %v859, %v923
        %925 = vmatmul.f32.gmra.mxu0 %v574
        %v926 = vpop.f32.mrf.mxu0
        %v927 = vadd.f32 %v862, %v926
        %928 = vmatmul.f32.gmra.mxu0 %v575
        %v929 = vpop.f32.mrf.mxu0
        %v930 = vadd.f32 %v865, %v929
        %931 = vmatmul.f32.gmra.mxu0 %v576
        %v932 = vpop.f32.mrf.mxu0
        %v933 = vadd.f32 %v868, %v932
        %934 = vmatmul.f32.gmra.mxu0 %v577
        %v935 = vpop.f32.mrf.mxu0
        %v936 = vadd.f32 %v871, %v935
        %937 = vmatmul.f32.gmra.mxu0 %v578
        %v938 = vpop.f32.mrf.mxu0
        %v939 = vadd.f32 %v874, %v938
        %940 = vdwg.mxu0
        %941 = vmatpush.msra.mxu0 0.0
        %942 = vmatpush.msra.mxu0 0.0
        %943 = vmatpush.msra.mxu0 0.0
        %944 = vmatpush.msra.mxu0 0.0
        %945 = vmatpush.msra.mxu0 0.0
        %946 = vmatpush.msra.mxu0 0.0
        %947 = vmatpush.msra.mxu0 0.0
        %948 = vmatpush.msra.mxu0 0.0
        %949 = vmatpush.msra.mxu0 0.0
        %950 = vmatpush.msra.mxu0 0.0
        %951 = vmatpush.msra.mxu0 0.0
        %952 = vmatpush.msra.mxu0 0.0
        %953 = vmatpush.msra.mxu0 0.0
        %954 = vmatpush.msra.mxu0 0.0
        %955 = vmatpush.msra.mxu0 0.0
        %956 = vmatpush.msra.mxu0 %v679
        %957 = vmatmul.f32.gmra.mxu0 %v645
        %v958 = vpop.f32.mrf.mxu0
        %v959 = vadd.f32 %v894, %v958
        %960 = vmatmul.f32.gmra.mxu0 %v647
        %v961 = vpop.f32.mrf.mxu0
        %v962 = vadd.f32 %v897, %v961
        %963 = vmatmul.f32.gmra.mxu0 %v649
        %v964 = vpop.f32.mrf.mxu0
        %v965 = vadd.f32 %v900, %v964
        %966 = vmatmul.f32.gmra.mxu0 %v651
        %v967 = vpop.f32.mrf.mxu0
        %v968 = vadd.f32 %v903, %v967
        %969 = vmatmul.f32.gmra.mxu0 %v653
        %v970 = vpop.f32.mrf.mxu0
        %v971 = vadd.f32 %v906, %v970
        %972 = vmatmul.f32.gmra.mxu0 %v655
        %v973 = vpop.f32.mrf.mxu0
        %v974 = vadd.f32 %v909, %v973
        %975 = vmatmul.f32.gmra.mxu0 %v657
        %v976 = vpop.f32.mrf.mxu0
        %v977 = vadd.f32 %v912, %v976
        %978 = vmatmul.f32.gmra.mxu0 %v659
        %v979 = vpop.f32.mrf.mxu0
        %v980 = vadd.f32 %v915, %v979
        %981 = vmatmul.f32.gmra.mxu0 %v661
        %v982 = vpop.f32.mrf.mxu0
        %v983 = vadd.f32 %v918, %v982
        %984 = vmatmul.f32.gmra.mxu0 %v663
        %v985 = vpop.f32.mrf.mxu0
        %v986 = vadd.f32 %v921, %v985
        %987 = vmatmul.f32.gmra.mxu0 %v665
        %v988 = vpop.f32.mrf.mxu0
        %v989 = vadd.f32 %v924, %v988
        %990 = vmatmul.f32.gmra.mxu0 %v667
        %v991 = vpop.f32.mrf.mxu0
        %v992 = vadd.f32 %v927, %v991
        %993 = vmatmul.f32.gmra.mxu0 %v669
        %v994 = vpop.f32.mrf.mxu0
        %v995 = vadd.f32 %v930, %v994
        %996 = vmatmul.f32.gmra.mxu0 %v671
        %v997 = vpop.f32.mrf.mxu0
        %v998 = vadd.f32 %v933, %v997
        %999 = vmatmul.f32.gmra.mxu0 %v673
        %v1000 = vpop.f32.mrf.mxu0
        %v1001 = vadd.f32 %v936, %v1000
        %1002 = vmatmul.f32.gmra.mxu0 %v675
        %v1003 = vpop.f32.mrf.mxu0
        %v1004 = vadd.f32 %v939, %v1003
        %1005 = vdwg.mxu0
        %1006 = vst [vmem:[%s197] sm:$0xff] %v959
        %1007 = vst [vmem:[%s197 + $0x8] sm:$0xff] %v962
        %1008 = vst [vmem:[%s197 + $0x10] sm:$0xff] %v965
        %1009 = vst [vmem:[%s197 + $0x18] sm:$0xff] %v968
        %1010 = vst [vmem:[%s197 + $0x20] sm:$0xff] %v971
        %1011 = vst [vmem:[%s197 + $0x28] sm:$0xff] %v974
        %1012 = vst [vmem:[%s197 + $0x30] sm:$0xff] %v977
        %1013 = vst [vmem:[%s197 + $0x38] sm:$0xff] %v980
        %1014 = vst [vmem:[%s197 + $0x40] sm:$0xff] %v983
        %1015 = vst [vmem:[%s197 + $0x48] sm:$0xff] %v986
        %1016 = vst [vmem:[%s197 + $0x50] sm:$0xff] %v989
        %1017 = vst [vmem:[%s197 + $0x58] sm:$0xff] %v992
        %1018 = vst [vmem:[%s197 + $0x60] sm:$0xff] %v995
        %1019 = vst [vmem:[%s197 + $0x68] sm:$0xff] %v998
        %1020 = vst [vmem:[%s197 + $0x70] sm:$0xff] %v1001
        %1021 = vst [vmem:[%s197 + $0x78] sm:$0xff] %v1004
        %s1022 = sand.u32 %s99, 1
        %s1023 = scalar_lea.sflag [#allocation4], %s1022
        %s1024 = sand.u32 %s99, 1
        %s1025 = smul.addr %s1024, 128
        %s1026 = scalar_lea.vmem [#allocation5], %s1025
        // Predicated region
        $region37: #{tpu_custom_call.1} parent=31 // pred_check
          %p1027 = pneg %p109
        $region38: #{tpu_custom_call.1} parent=31 // pred_check_branch
          %1029 = sbr.rel (%p1027) target = $region40
        $region39: #{tpu_custom_call.1} parent=31 // pred_region
          %s1030 = smul.u32 16, %s18
          %1032 = vsyncadd %s1023, 0
          %s1033 = smul.addr %s1030, 8
          %s1034 = scalar_lea.hbm %s3, %s1033
          %s1035 = sshll.u32 %s1026, 4
          %s1036 = int_to_ptr.vmem [resolvable:$true] %s1035
          %s1037 = sshll.u32 %s1034, 4
          %s1038 = int_to_ptr.hbm [resolvable:$true] %s1037
          %1043 = dma.vmem_to_hbm [thread:$0]  %s1036, 2048, %s1038, %s1023, 128, 128, 8
        $region40: #{tpu_custom_call.1} parent=31 // pred_fallthru
          _
      $region32: #{tpu_custom_call.1} parent=5 // pred_fallthru
        _
      %p1044 = scmp.le.s32.totalorder 2, %s13
      // Predicated region
      $region41: #{tpu_custom_call.1} parent=5 // pred_check
        %p1045 = pneg %p1044
      $region42: #{tpu_custom_call.1} parent=5 // pred_check_branch
        %1047 = sbr.rel (%p1045) target = $region44
      $region43: #{tpu_custom_call.1} parent=5 // pred_region
        %s1048 = ssub.s32 %s13, 2
        // Predicated region
        $region45: #{tpu_custom_call.1} parent=43 // pred_check
          %p1049 = pneg %p115
        $region46: #{tpu_custom_call.1} parent=43 // pred_check_branch
          %1051 = sbr.rel (%p1049) target = $region48
        $region47: #{tpu_custom_call.1} parent=43 // pred_region
          %s1052 = sand.u32 %s100, 1
          %s1053 = scalar_lea.sflag [#allocation4], %s1052
          %s1054 = sand.u32 %s100, 1
          %s1055 = smul.addr %s1054, 128
          %s1056 = scalar_lea.vmem [#allocation5], %s1055
          %1058 = dma.done %s1053, 2048
        $region48: #{tpu_custom_call.1} parent=43 // pred_fallthru
          _
      $region44: #{tpu_custom_call.1} parent=5 // pred_fallthru
        _
    $region6: #{tpu_custom_call.1} parent=1 // loop_footer
      %s17 = sadd.s32 1, %s13
    $region7: #{tpu_custom_call.1} parent=1 // loop_footer_branch
      %12 = sbr.rel target = $region3
    $region8: #{tpu_custom_call.1} parent=1 // loop_exit
      _
    %1059 = vsyncpa [#allocation3], 1
    %s1060 = scalar_lea.sflag [#allocation3], 1
    %1061 = vsyncpa %s1060, 1
    %1062 = vsyncpa [#allocation4], 1
    %s1063 = scalar_lea.sflag [#allocation4], 1
    %1064 = vsyncpa %s1063, 1

</llo_original>
